<compile_context>
chip_gen: v6e
topology: v6e:2x2x1
jax: 0.10.0
libtpu: 0.0.40
codegen_flags: <defaults>
</compile_context>

<pallas_src>
import functools

import jax
import jax.numpy as jnp
from jax.experimental import pallas as pl
from jax.experimental.pallas import tpu as pltpu

_LANE = 128

# Robust across minor jax versions.
_CompilerParams = getattr(pltpu, "CompilerParams",
                          getattr(pltpu, "TPUCompilerParams", None))


# --------------------------------------------------------------------------- #
# Kernels
# --------------------------------------------------------------------------- #
def _fused_kernel(x_ref, gamma_ref, beta_ref, o_ref, *, eps, inv_count):
    # One sample fully resident: x_ref (C, T), gamma/beta (C, 1).
    x = x_ref[...].astype(jnp.float32)                       # (C, T)
    mean = jnp.sum(x, keepdims=True) * inv_count             # (1, 1)
    xc = x - mean
    # Exact two-sweep variance (matches the PyTorch formula; x is in VMEM so
    # the extra VALU sweep is free on this bandwidth-bound kernel).
    var = jnp.sum(xc * xc, keepdims=True) * inv_count        # (1, 1)
    inv_std = jax.lax.rsqrt(var + eps)                       # EUP rsqrt
    scale = gamma_ref[...].astype(jnp.float32) * inv_std     # (C, 1)
    beta = beta_ref[...].astype(jnp.float32)                 # (C, 1)
    o_ref[...] = (xc * scale + beta).astype(o_ref.dtype)


def _stats_kernel(x_ref, gamma_ref, beta_ref, scale_ref, shift_ref,
                  s1_ref, s2_ref, *, eps, inv_count, t_total, tile_t,
                  needs_mask):
    # Pass 1: per-sample sum / sum-of-squares over T tiles; finalize to the
    # folded per-channel (C, 1) scale/shift on the last tile.
    t = pl.program_id(1)

    @pl.when(t == 0)
    def _init():
        s1_ref[...] = jnp.zeros_like(s1_ref)
        s2_ref[...] = jnp.zeros_like(s2_ref)

    x = x_ref[...].astype(jnp.float32)                       # (C, tT)
    if needs_mask:
        # Ragged last tile: OOB lanes contain garbage -> zero them before the
        # accumulation.  (Cheap VPU select; no host-side padding pass needed.)
        col = jax.lax.broadcasted_iota(jnp.int32, x.shape, dimension=1)
        x = jnp.where(col < (t_total - t * tile_t), x, 0.0)

    # Vector partial sums: only a sublane reduce per tile; the cross-lane tree
    # reduce happens once in the finalize branch (XLU relief).
    s1_ref[...] += jnp.sum(x, axis=0, keepdims=True)         # (1, tT)
    s2_ref[...] += jnp.sum(x * x, axis=0, keepdims=True)     # (1, tT)

    @pl.when(t == pl.num_programs(1) - 1)
    def _finalize():
        s1 = jnp.sum(s1_ref[...], keepdims=True)             # (1, 1)
        s2 = jnp.sum(s2_ref[...], keepdims=True)             # (1, 1)
        mean = s1 * inv_count
        # E[x^2] - mean^2 with f32 lane-parallel accumulation: each lane only
        # sums C * n_tiles values, which keeps cancellation error small.
        var = jnp.maximum(s2 * inv_count - mean * mean, 0.0)
        inv_std = jax.lax.rsqrt(var + eps)
        scale = gamma_ref[...].astype(jnp.float32) * inv_std  # (C, 1)
        scale_ref[...] = scale
        shift_ref[...] = beta_ref[...].astype(jnp.float32) - mean * scale


def _normalize_kernel(x_ref, scale_ref, shift_ref, o_ref):
    # Pass 2: pure streaming y = x * scale + shift.  Always f32 arithmetic
    # (correct on v5e, no bf16 cancellation); cast only at the store.
    y = x_ref[...].astype(jnp.float32) * scale_ref[...] + shift_ref[...]
    o_ref[...] = y.astype(o_ref.dtype)


# --------------------------------------------------------------------------- #
# Sizing helpers
# --------------------------------------------------------------------------- #
def _vmem_budget_bytes():
    """Usable scoped-VMEM budget for this chip generation (with headroom)."""
    cap = 64 << 20  # conservative fallback = v7x physical per-core VMEM
    try:
        info = pltpu.get_tpu_info()
        cap = int(getattr(info, "vmem_capacity_bytes", cap))
    except Exception:  # interpret mode / older jax: keep conservative fallback
        pass
    # ~20% headroom for Mosaic internal scratch and double-buffered blocks:
    # v7x(64MiB) -> ~51 MiB, v5e/v6e(128MiB) -> ~102 MiB.
    return max(16 << 20, int(cap * 0.8))


def _vmem_limit(footprint_bytes, budget_bytes):
    want = max(32 << 20, int(footprint_bytes * 1.3) + (1 << 20))
    return int(min(budget_bytes, want))


def _pick_time_tile(C, T, target_block_bytes=2 << 20):
    """Lane-dense time tile sized from a byte budget (f32 accounting)."""
    if T <= _LANE:
        return int(T)  # block == full dim is always legal; no masking needed
    per_col = 4 * max(C, 1)
    tT = max(_LANE, (target_block_bytes // per_col) // _LANE * _LANE)
    # Never exceed the array's time extent (rounded DOWN to the lane width so
    # blocks are always <= the array dim; the ragged tail is masked in-kernel).
    tT = min(tT, (T // _LANE) * _LANE)
    return int(tT)


# --------------------------------------------------------------------------- #
# Wrapper
# --------------------------------------------------------------------------- #
def global_channel_layer_norm(x, gamma=None, beta=None, eps=1e-5,
                              force_two_pass=False):
    """x: (N, C, T); gamma/beta: (C, 1) or None (-> no affine). Matches PyTorch."""
    N, C, T = x.shape
    if gamma is None:
        gamma = jnp.ones((C, 1), jnp.float32)      # elementwise_affine=False
    if beta is None:
        beta = jnp.zeros((C, 1), jnp.float32)
    assert gamma.shape == (C, 1) and beta.shape == (C, 1)

    itemsize = jnp.dtype(x.dtype).itemsize
    inv_count = 1.0 / float(C * T)
    budget = _vmem_budget_bytes()
    is_small_vmem = budget <= (56 << 20)            # v7x-like (64 MiB physical)

    tT = _pick_time_tile(C, T)
    single_tile = T <= tT

    slab_in = C * T * itemsize
    slab_f32 = C * T * 4
    # in + out double-buffered + ~3 f32 temps inside the fused kernel.
    fused_footprint = 4 * slab_in + 3 * slab_f32 + 8 * C * 4
    fits_fused = fused_footprint <= int(budget * 0.9)

    use_fused = fits_fused and (single_tile or not force_two_pass)
    # v7x has 2 TensorCores: grid=(N,) starves one core when N == 1; the
    # two-pass (N, nT) parallel x parallel grid feeds both.  (No-op on v5e/v6e.)
    if use_fused and is_small_vmem and N < 2 and not single_tile:
        use_fused = False

    if use_fused:
        kernel = functools.partial(_fused_kernel, eps=eps, inv_count=inv_count)
        return pl.pallas_call(
            kernel,
            out_shape=jax.ShapeDtypeStruct((N, C, T), x.dtype),
            grid_spec=pltpu.PrefetchScalarGridSpec(
                num_scalar_prefetch=0,
                grid=(N,),
                in_specs=[
                    pl.BlockSpec((None, C, T), lambda n: (n, 0, 0)),
                    pl.BlockSpec((C, 1), lambda n: (0, 0)),
                    pl.BlockSpec((C, 1), lambda n: (0, 0)),
                ],
                out_specs=pl.BlockSpec((None, C, T), lambda n: (n, 0, 0)),
            ),
            compiler_params=_CompilerParams(
                dimension_semantics=("parallel",),
                vmem_limit_bytes=_vmem_limit(fused_footprint, budget)),
        )(x, gamma, beta)

    # ---------------- two-pass (scalable) path ---------------- #
    nT = pl.cdiv(T, tT)
    needs_mask = (T % tT) != 0
    block_in = C * tT * itemsize

    # Pass 1: per-sample stats -> folded (C, 1) scale/shift.
    stats_kernel = functools.partial(
        _stats_kernel, eps=eps, inv_count=inv_count,
        t_total=T, tile_t=tT, needs_mask=needs_mask)
    p1_footprint = 2 * block_in + 2 * (tT * 4) + 8 * C * 4 + 4 * C * itemsize
    scale, shift = pl.pallas_call(
        stats_kernel,
        out_shape=(jax.ShapeDtypeStruct((N, C, 1), jnp.float32),
                   jax.ShapeDtypeStruct((N, C, 1), jnp.float32)),
        grid_spec=pltpu.PrefetchScalarGridSpec(
            num_scalar_prefetch=0,
            grid=(N, nT),
            in_specs=[
                pl.BlockSpec((None, C, tT), lambda n, t: (n, 0, t)),
                pl.BlockSpec((C, 1), lambda n, t: (0, 0)),
                pl.BlockSpec((C, 1), lambda n, t: (0, 0)),
            ],
            out_specs=(
                pl.BlockSpec((None, C, 1), lambda n, t: (n, 0, 0)),
                pl.BlockSpec((None, C, 1), lambda n, t: (n, 0, 0)),
            ),
            scratch_shapes=[pltpu.VMEM((1, tT), jnp.float32),
                            pltpu.VMEM((1, tT), jnp.float32)],
        ),
        compiler_params=_CompilerParams(
            dimension_semantics=("parallel", "arbitrary"),
            vmem_limit_bytes=_vmem_limit(p1_footprint, budget)),
    )(x, gamma, beta)

    # Pass 2: elementwise normalize; both axes parallel (megacore friendly).
    # Ragged last tile: OOB output stores are dropped by Pallas, so no
    # host-side padding or trailing slice is needed.
    p2_footprint = 4 * block_in + 8 * C * 4
    out = pl.pallas_call(
        _normalize_kernel,
        out_shape=jax.ShapeDtypeStruct((N, C, T), x.dtype),
        grid_spec=pltpu.PrefetchScalarGridSpec(
            num_scalar_prefetch=0,
            grid=(N, nT),
            in_specs=[
                pl.BlockSpec((None, C, tT), lambda n, t: (n, 0, t)),
                pl.BlockSpec((None, C, 1), lambda n, t: (n, 0, 0)),
                pl.BlockSpec((None, C, 1), lambda n, t: (n, 0, 0)),
            ],
            out_specs=pl.BlockSpec((None, C, tT), lambda n, t: (n, 0, t)),
        ),
        compiler_params=_CompilerParams(
            dimension_semantics=("parallel", "parallel"),
            vmem_limit_bytes=_vmem_limit(p2_footprint, budget)),
    )(x, scale, shift)
    return out


# --------------------------------------------------------------------------- #
# Reference + self-check
# --------------------------------------------------------------------------- #
def _reference(x, gamma, beta, eps=1e-5):
    xf = x.astype(jnp.float32)
    mean = jnp.mean(xf, axis=(1, 2), keepdims=True)
    var = jnp.mean((xf - mean) ** 2, axis=(1, 2), keepdims=True)
    y = (gamma[None].astype(jnp.float32) * (xf - mean) / jnp.sqrt(var + eps)
         + beta[None].astype(jnp.float32))
    return y.astype(x.dtype)


if __name__ == "__main__":
    eps = 1e-5
    key = jax.random.PRNGKey(0)
    k1, k2, k3 = jax.random.split(key, 3)

    # Small module-consistent shape (N x C x T): fused single pass, params as
    # in the PyTorch __init__ (gamma=ones, beta=zeros).
    N, C, T = 2, 4, 16
    x = jax.random.normal(k1, (N, C, T), dtype=jnp.float32)
    gamma = jnp.ones((C, 1), jnp.float32)
    beta = jnp.zeros((C, 1), jnp.float32)
    out = jax.block_until_ready(global_channel_layer_norm(x, gamma, beta, eps=eps))
    ref = _reference(x, gamma, beta, eps=eps)
    assert out.shape == (N, C, T)
    assert jnp.allclose(out, ref, atol=1e-4, rtol=1e-4), "fused path mismatch"

    # Ragged T (1100 % 128 != 0), non-trivial affine: exercises the two-pass
    # tiled path with in-kernel tail masking and dropped OOB stores.
    N2, C2, T2 = 2, 8, 1100
    x2 = jax.random.normal(k2, (N2, C2, T2), dtype=jnp.float32) * 0.5 + 0.25
    gamma2 = jax.random.normal(jax.random.PRNGKey(1), (C2, 1), dtype=jnp.float32)
    beta2 = jax.random.normal(jax.random.PRNGKey(2), (C2, 1), dtype=jnp.float32)
    out2 = jax.block_until_ready(
        global_channel_layer_norm(x2, gamma2, beta2, eps=eps, force_two_pass=True))
    ref2 = _reference(x2, gamma2, beta2, eps=eps)
    assert out2.shape == (N2, C2, T2)
    assert jnp.allclose(out2, ref2, atol=1e-4, rtol=1e-4), "two-pass mismatch"

    # bf16 input goes through the exact same code paths (f32 stats + f32 FMA,
    # cast only at the store).
    x3 = (jax.random.normal(k3, (N2, C2, T2), dtype=jnp.float32) * 0.5
          ).astype(jnp.bfloat16)
    out3 = jax.block_until_ready(
        global_channel_layer_norm(x3, gamma2, beta2, eps=eps, force_two_pass=True))
    ref3 = _reference(x3, gamma2, beta2, eps=eps)
    assert out3.shape == (N2, C2, T2)
    assert jnp.allclose(out3.astype(jnp.float32), ref3.astype(jnp.float32),
                        atol=3e-2, rtol=3e-2), "bf16 mismatch"

    print("KERNEL_OK")
</pallas_src>

<mosaic_0001>
module attributes {stable_mosaic.version = 11 : i64} {
  func.func @_fused_kernel(%arg0: i32, %arg1: memref<1x4x16xf32, #tpu.memory_space<vmem>>, %arg2: memref<4x1xf32, #tpu.memory_space<vmem>>, %arg3: memref<4x1xf32, #tpu.memory_space<vmem>>, %arg4: memref<1x4x16xf32, #tpu.memory_space<vmem>>) attributes {dimension_semantics = [#tpu.dimension_semantics<parallel>], iteration_bounds = array<i64: 2>, scalar_prefetch = 0 : i64, scratch_operands = 0 : i64, tpu.core_type = #tpu.core_type<tc>, window_params = [{transform_indices = @transform_0, window_bounds = array<i64: 1, 4, 16>}, {pipeline_mode = #tpu.pipeline_mode<synchronous>, transform_indices = @transform_1, window_bounds = array<i64: 4, 1>}, {pipeline_mode = #tpu.pipeline_mode<synchronous>, transform_indices = @transform_2, window_bounds = array<i64: 4, 1>}, {transform_indices = @transform_3, window_bounds = array<i64: 1, 4, 16>}]} {
    %c0 = arith.constant 0 : index
    %c0_0 = arith.constant 0 : index
    %c0_1 = arith.constant 0 : index
    %0 = vector.load %arg1[%c0, %c0_0, %c0_1] : memref<1x4x16xf32, #tpu.memory_space<vmem>>, vector<1x4x16xf32>
    %1 = vector.shape_cast %0 : vector<1x4x16xf32> to vector<4x16xf32>
    %2 = vector.shape_cast %1 : vector<4x16xf32> to vector<1x4x16xf32>
    %cst = arith.constant dense<0.000000e+00> : vector<1xf32>
    %3 = vector.multi_reduction <add>, %2, %cst [1, 2] : vector<1x4x16xf32> to vector<1xf32>
    %4 = vector.shape_cast %3 : vector<1xf32> to vector<1x1x1xf32>
    %5 = vector.extract %4[0, 0, 0] : f32 from vector<1x1x1xf32>
    %6 = vector.broadcast %5 : f32 to vector<1x1xf32>
    %cst_2 = arith.constant 1.562500e-02 : f32
    %7 = vector.broadcast %cst_2 : f32 to vector<1x1xf32>
    %8 = arith.mulf %6, %7 : vector<1x1xf32>
    %9 = vector.broadcast %8 : vector<1x1xf32> to vector<4x16xf32>
    %10 = arith.subf %1, %9 : vector<4x16xf32>
    %11 = arith.mulf %10, %10 : vector<4x16xf32>
    %12 = vector.shape_cast %11 : vector<4x16xf32> to vector<1x4x16xf32>
    %cst_3 = arith.constant dense<0.000000e+00> : vector<1xf32>
    %13 = vector.multi_reduction <add>, %12, %cst_3 [1, 2] : vector<1x4x16xf32> to vector<1xf32>
    %14 = vector.shape_cast %13 : vector<1xf32> to vector<1x1x1xf32>
    %15 = vector.extract %14[0, 0, 0] : f32 from vector<1x1x1xf32>
    %16 = vector.broadcast %15 : f32 to vector<1x1xf32>
    %cst_4 = arith.constant 1.562500e-02 : f32
    %17 = vector.broadcast %cst_4 : f32 to vector<1x1xf32>
    %18 = arith.mulf %16, %17 : vector<1x1xf32>
    %cst_5 = arith.constant 9.99999974E-6 : f32
    %19 = vector.broadcast %cst_5 : f32 to vector<1x1xf32>
    %20 = arith.addf %18, %19 : vector<1x1xf32>
    %21 = math.rsqrt %20 : vector<1x1xf32>
    %c0_6 = arith.constant 0 : index
    %c0_7 = arith.constant 0 : index
    %22 = vector.load %arg2[%c0_6, %c0_7] : memref<4x1xf32, #tpu.memory_space<vmem>>, vector<4x1xf32>
    %23 = vector.broadcast %21 : vector<1x1xf32> to vector<4x1xf32>
    %24 = arith.mulf %22, %23 : vector<4x1xf32>
    %c0_8 = arith.constant 0 : index
    %c0_9 = arith.constant 0 : index
    %25 = vector.load %arg3[%c0_8, %c0_9] : memref<4x1xf32, #tpu.memory_space<vmem>>, vector<4x1xf32>
    %26 = vector.broadcast %24 : vector<4x1xf32> to vector<4x16xf32>
    %27 = arith.mulf %10, %26 : vector<4x16xf32>
    %28 = vector.broadcast %25 : vector<4x1xf32> to vector<4x16xf32>
    %29 = arith.addf %27, %28 : vector<4x16xf32>
    %c0_10 = arith.constant 0 : index
    %c0_11 = arith.constant 0 : index
    %c0_12 = arith.constant 0 : index
    %30 = vector.load %arg4[%c0_10, %c0_11, %c0_12] : memref<1x4x16xf32, #tpu.memory_space<vmem>>, vector<1x4x16xf32>
    %31 = vector.shape_cast %30 : vector<1x4x16xf32> to vector<4x16xf32>
    %32 = vector.shape_cast %29 : vector<4x16xf32> to vector<1x4x16xf32>
    tpu.vector_store %arg4[%c0_10, %c0_11, %c0_12], %32 {strides = array<i32>} : memref<1x4x16xf32, #tpu.memory_space<vmem>>, vector<1x4x16xf32>,
    return
  }
  func.func @transform_0(%arg0: i32) -> (i32, i32, i32) {
    %c0_i32 = arith.constant 0 : i32
    %c0_i32_0 = arith.constant 0 : i32
    %c0_i32_1 = arith.constant 0 : i32
    return %arg0, %c0_i32, %c0_i32_0 : i32, i32, i32
  }
  func.func @transform_1(%arg0: i32) -> (i32, i32) {
    %c0_i32 = arith.constant 0 : i32
    %c0_i32_0 = arith.constant 0 : i32
    %c0_i32_1 = arith.constant 0 : i32
    return %c0_i32, %c0_i32_0 : i32, i32
  }
  func.func @transform_2(%arg0: i32) -> (i32, i32) {
    %c0_i32 = arith.constant 0 : i32
    %c0_i32_0 = arith.constant 0 : i32
    %c0_i32_1 = arith.constant 0 : i32
    return %c0_i32, %c0_i32_0 : i32, i32
  }
  func.func @transform_3(%arg0: i32) -> (i32, i32, i32) {
    %c0_i32 = arith.constant 0 : i32
    %c0_i32_0 = arith.constant 0 : i32
    %c0_i32_1 = arith.constant 0 : i32
    return %arg0, %c0_i32, %c0_i32_0 : i32, i32, i32
  }
}

</mosaic_0001>

<llo_original>
// kernel: tpu_custom_call.1
$region0: #{tpu_custom_call.1}
  #allocation0 [shape = 'u32[]', space=smem, size = 0x4, offset = 0x4, fixed_abs, tag = 'smem constant byte address 0x4 - core index']
  #allocation1 [shape = 'u32[144,128]{1,0:T(1,128)}', space=vmem, size = 0x12000, scoped, tag = 'internal scratch']
  %s0 = inlined_call_operand.vmem [shape: f32[2,4,16], index: 0, kind: input, shape index: {}]
  %s1 = inlined_call_operand.vmem [shape: f32[4,1], index: 1, kind: input, shape index: {}]
  %s2 = inlined_call_operand.vmem [shape: f32[4,1], index: 2, kind: input, shape index: {}]
  %s3 = inlined_call_operand.hbm [shape: f32[2,4,16], index: 3, kind: output, shape index: {}]
  %s4 = sld [smem:[#allocation0]]
  $region45: #{tpu_custom_call.1} parent=0
    _
  %s6 = ssub.s32 1, %s4
  %s7 = scalar_select 0, %s6, %s4
  $region1: #{tpu_custom_call.1} parent=0
    #allocation2 [shape = 'u8[4096]{0}', space=vmem, size = 0x1000, scoped, tag = 'output window, operand 0']
    #allocation3 [shape = 's32[2]{0}', space=sflag, size = 0x8, scoped, tag = 'scoped memory for tpu_custom_call.1']
    %8 = vsyncpa [#allocation3], 0
    %s9 = scalar_lea.sflag [#allocation3], 1
    %10 = vsyncpa %s9, 0
    loop: start=0, step=1, limit=4
    $region2: #{tpu_custom_call.1} parent=1 // loop_pre_header
      _
    $region3: #{tpu_custom_call.1} parent=1 // loop_header
      %s12 = sphi 0, %s16
      %p13 = scmp.ge.s32.totalorder %s12, 4
      %s22 = sphi 0, %s24
      %s25 = sphi 0, %s22
      %s26 = sphi 0, %s25
      %s42 = sphi 0, %s26
      %s46 = sphi 0, %s46
      %s48 = sphi 0, %s46
      %s49 = sphi 0, %s48
      %s63 = sphi 0, %s49
      %s67 = sphi 0, %s67
      %s69 = sphi 0, %s67
      %s70 = sphi 0, %s69
      %s84 = sphi 0, %s70
      %s90 = sphi 0, %s92
      %s93 = sphi 0, %s90
      %s94 = sphi 0, %s93
      %s110 = sphi 0, %s94
    $region4: #{tpu_custom_call.1} parent=1 // loop_header_branch
      %15 = sbr.rel (%p13) target = $region8
    $region5: #{tpu_custom_call.1} parent=1 // loop_body
      %s17 = ssub.s32 %s12, 1
      %s18 = ssub.s32 %s12, 2
      %s19 = sadd.s32 %s12, 1
      %s20 = ssub.s32 %s12, %s19
      %p21 = scmp.eq.s32.totalorder %s20, 0
      %s23 = sadd.s32 %s22, 1
      %s24 = scalar_select %p21, %s22, %s23
      %p27 = pneg %p21
      %p28 = scmp.eq.s32.totalorder %s12, 1
      %p29 = por %p27, %p28
      %p30 = scmp.ne.s32.totalorder %s22, %s25
      %p31 = scmp.eq.s32.totalorder %s12, 0
      %p32 = por %p30, %p31
      %p33 = scmp.ne.s32.totalorder %s22, %s25
      %p34 = scmp.eq.s32.totalorder %s17, 1
      %p35 = por %p33, %p34
      %p36 = scmp.ne.s32.totalorder %s25, %s26
      %p37 = scmp.eq.s32.totalorder %s17, 0
      %p38 = por %p36, %p37
      %p39 = scmp.ne.s32.totalorder %s25, %s26
      %p40 = scmp.eq.s32.totalorder %s18, 1
      %p41 = por %p39, %p40
      %p43 = scmp.ne.s32.totalorder %s26, %s42
      %p44 = scmp.eq.s32.totalorder %s18, 0
      %p45 = por %p43, %p44
      %s47 = sadd.s32 %s46, 1
      %p50 = scmp.eq.s32.totalorder %s12, 1
      %p51 = scmp.ne.s32.totalorder %s46, %s48
      %p52 = scmp.eq.s32.totalorder %s12, 0
      %p53 = por %p51, %p52
      %p54 = scmp.ne.s32.totalorder %s46, %s48
      %p55 = scmp.eq.s32.totalorder %s17, 1
      %p56 = por %p54, %p55
      %p57 = scmp.ne.s32.totalorder %s48, %s49
      %p58 = scmp.eq.s32.totalorder %s17, 0
      %p59 = por %p57, %p58
      %p60 = scmp.ne.s32.totalorder %s48, %s49
      %p61 = scmp.eq.s32.totalorder %s18, 1
      %p62 = por %p60, %p61
      %p64 = scmp.ne.s32.totalorder %s49, %s63
      %p65 = scmp.eq.s32.totalorder %s18, 0
      %p66 = por %p64, %p65
      %s68 = sadd.s32 %s67, 1
      %p71 = scmp.eq.s32.totalorder %s12, 1
      %p72 = scmp.ne.s32.totalorder %s67, %s69
      %p73 = scmp.eq.s32.totalorder %s12, 0
      %p74 = por %p72, %p73
      %p75 = scmp.ne.s32.totalorder %s67, %s69
      %p76 = scmp.eq.s32.totalorder %s17, 1
      %p77 = por %p75, %p76
      %p78 = scmp.ne.s32.totalorder %s69, %s70
      %p79 = scmp.eq.s32.totalorder %s17, 0
      %p80 = por %p78, %p79
      %p81 = scmp.ne.s32.totalorder %s69, %s70
      %p82 = scmp.eq.s32.totalorder %s18, 1
      %p83 = por %p81, %p82
      %p85 = scmp.ne.s32.totalorder %s70, %s84
      %p86 = scmp.eq.s32.totalorder %s18, 0
      %p87 = por %p85, %p86
      %s88 = ssub.s32 %s12, %s19
      %p89 = scmp.eq.s32.totalorder %s88, 0
      %s91 = sadd.s32 %s90, 1
      %s92 = scalar_select %p89, %s90, %s91
      %p95 = pneg %p89
      %p96 = scmp.eq.s32.totalorder %s12, 1
      %p97 = por %p95, %p96
      %p98 = scmp.ne.s32.totalorder %s90, %s93
      %p99 = scmp.eq.s32.totalorder %s12, 0
      %p100 = por %p98, %p99
      %p101 = scmp.ne.s32.totalorder %s90, %s93
      %p102 = scmp.eq.s32.totalorder %s17, 1
      %p103 = por %p101, %p102
      %p104 = scmp.ne.s32.totalorder %s93, %s94
      %p105 = scmp.eq.s32.totalorder %s17, 0
      %p106 = por %p104, %p105
      %p107 = scmp.ne.s32.totalorder %s93, %s94
      %p108 = scmp.eq.s32.totalorder %s18, 1
      %p109 = por %p107, %p108
      %p111 = scmp.ne.s32.totalorder %s94, %s110
      %p112 = scmp.eq.s32.totalorder %s18, 0
      %p113 = por %p111, %p112
      %p114 = scmp.le.s32.totalorder 1, %s12
      %p115 = scmp.lt.s32.totalorder %s12, 3
      %p116 = pnand %p114, %p115
      %p117 = pneg %p116
      // Predicated region
      $region9: #{tpu_custom_call.1} parent=5 // pred_check
        _
      $region10: #{tpu_custom_call.1} parent=5 // pred_check_branch
        %119 = sbr.rel (%p116) target = $region12
      $region11: #{tpu_custom_call.1} parent=5 // pred_region
        %s120 = ssub.s32 %s12, 1
        // Predicated region
        $region13: #{tpu_custom_call.1} parent=11 // pred_check
          %p121 = pneg %p59
        $region14: #{tpu_custom_call.1} parent=11 // pred_check_branch
          %123 = sbr.rel (%p121) target = $region16
        $region15: #{tpu_custom_call.1} parent=11 // pred_region
          _
        $region16: #{tpu_custom_call.1} parent=11 // pred_fallthru
          _
        // Predicated region
        $region17: #{tpu_custom_call.1} parent=11 // pred_check
          %p124 = pneg %p80
        $region18: #{tpu_custom_call.1} parent=11 // pred_check_branch
          %126 = sbr.rel (%p124) target = $region20
        $region19: #{tpu_custom_call.1} parent=11 // pred_region
          _
        $region20: #{tpu_custom_call.1} parent=11 // pred_fallthru
          _
      $region12: #{tpu_custom_call.1} parent=5 // pred_fallthru
        _
      %p127 = scmp.lt.s32.totalorder %s12, 2
      // Predicated region
      $region21: #{tpu_custom_call.1} parent=5 // pred_check
        %p128 = pneg %p127
      $region22: #{tpu_custom_call.1} parent=5 // pred_check_branch
        %130 = sbr.rel (%p128) target = $region24
      $region23: #{tpu_custom_call.1} parent=5 // pred_region
        // Predicated region
        $region25: #{tpu_custom_call.1} parent=23 // pred_check
          %p131 = pneg %p32
        $region26: #{tpu_custom_call.1} parent=23 // pred_check_branch
          %133 = sbr.rel (%p131) target = $region28
        $region27: #{tpu_custom_call.1} parent=23 // pred_region
          %p134 = scmp.lt.s32.totalorder %s12, 1
          %s135 = scalar_select %p134, %s12, 1
          %s136 = smul.addr %s135, 4
          %s137 = scalar_lea.vmem %s0, %s136
        $region28: #{tpu_custom_call.1} parent=23 // pred_fallthru
          _
      $region24: #{tpu_custom_call.1} parent=5 // pred_fallthru
        _
      %p138 = scmp.le.s32.totalorder 1, %s12
      %p139 = scmp.lt.s32.totalorder %s12, 3
      %p140 = pnand %p138, %p139
      %p141 = pneg %p140
      // Predicated region
      $region29: #{tpu_custom_call.1} parent=5 // pred_check
        _
      $region30: #{tpu_custom_call.1} parent=5 // pred_check_branch
        %143 = sbr.rel (%p140) target = $region32
      $region31: #{tpu_custom_call.1} parent=5 // pred_region
        %s144 = ssub.s32 %s12, 1
        %p145 = scmp.lt.s32.totalorder %s17, 1
        %s146 = scalar_select %p145, %s17, 1
        %s147 = smul.addr %s146, 4
        %s148 = scalar_lea.vmem %s0, %s147
        %p149 = pneg %p38
        %p150 = pneg %p35
        %p151 = pneg %p59
        %p152 = pneg %p56
        %p153 = pneg %p80
        %p154 = pneg %p77
        %p155 = pneg %p106
        %p156 = pneg %p103
        %s157 = sand.u32 %s93, 1
        %s158 = scalar_lea.sflag [#allocation3], %s157
        %s159 = sand.u32 %s93, 1
        %s160 = smul.addr %s159, 4
        %s161 = scalar_lea.vmem [#allocation2], %s160
        %p162 = scmp.lt.s32.totalorder %s17, 1
        %s163 = scalar_select %p162, %s17, 1
        %s164 = smul.addr %s163, 4
        %s165 = scalar_lea.vmem %s0, %s164
        %v166 = vld [vmem:[%s165] sm:$0xf]
        %vm167 = vcmask 125952
        %v168 = vsel %vm167, %v166, 0.0
        %169 = vadd.xlane.f32.xlu0 %v168
        %v170 = vpop.xlane.xlu0 %169
        %v171 = vrot.slane %v170, 4
        %v172 = vadd.f32 %v170, %v171
        %v173 = vrot.slane %v172, 2
        %v174 = vadd.f32 %v172, %v173
        %v175 = vrot.slane %v174, 1
        %v176 = vadd.f32 %v174, %v175
        %s177 = vtos %v176
        %v178 = vstv %s177
        %v179 = vmul.f32 %v178, 0.015625
        %v180 = vsub.f32 %v166, %v179
        %v181 = vmul.f32 %v180, %v180
        %v182 = vsel %vm167, %v181, 0.0
        %183 = vadd.xlane.f32.xlu0 %v182
        %v184 = vpop.xlane.xlu0 %183
        %v185 = vrot.slane %v184, 4
        %v186 = vadd.f32 %v184, %v185
        %v187 = vrot.slane %v186, 2
        %v188 = vadd.f32 %v186, %v187
        %v189 = vrot.slane %v188, 1
        %v190 = vadd.f32 %v188, %v189
        %s191 = vtos %v190
        %v192 = vstv %s191
        %v193 = vmul.f32 %v192, 0.015625
        %v194 = vadd.f32 %v193, 1e-05
        %v195 = vrsqrt.pop %v194
        %v196 = vld [vmem:[%s1] sm:$0xf]
        %v197 = vmul.f32 %v196, %v195
        %v198 = vld [vmem:[%s2] sm:$0xf]
        %200 = vset.pattern.permute.xlu0 0
        %201 = vperm.xlu0 %200, %v197
        %v202 = vpop.permute.xlu0 %201
        %v204 = vmul.f32 %v180, %v202
        %206 = vset.pattern.permute.xlu0 0
        %207 = vperm.xlu0 %206, %v198
        %v208 = vpop.permute.xlu0 %207
        %v210 = vadd.f32 %v204, %v208
        %211 = vst.msk [vmem:[%s161] sm:$0xf] %vm167, %v210
        %s212 = sand.u32 %s93, 1
        %s213 = scalar_lea.sflag [#allocation3], %s212
        %s214 = sand.u32 %s93, 1
        %s215 = smul.addr %s214, 4
        %s216 = scalar_lea.vmem [#allocation2], %s215
        // Predicated region
        $region33: #{tpu_custom_call.1} parent=31 // pred_check
          %p217 = pneg %p103
        $region34: #{tpu_custom_call.1} parent=31 // pred_check_branch
          %219 = sbr.rel (%p217) target = $region36
        $region35: #{tpu_custom_call.1} parent=31 // pred_region
          %s221 = ssub.s32 64, 64
          %222 = vsyncadd %s213, %s221
          %s223 = smul.addr %s17, 64
          %s224 = scalar_lea.hbm %s3, %s223
          %s226 = sshll.u32 %s216, 4
          %s227 = int_to_ptr.vmem [resolvable:$true] %s226
          %229 = dma.vmem_to_hbm [thread:$0]  %s227, 64, %s224, %s213
        $region36: #{tpu_custom_call.1} parent=31 // pred_fallthru
          _
      $region32: #{tpu_custom_call.1} parent=5 // pred_fallthru
        _
      %p230 = scmp.le.s32.totalorder 2, %s12
      // Predicated region
      $region37: #{tpu_custom_call.1} parent=5 // pred_check
        %p231 = pneg %p230
      $region38: #{tpu_custom_call.1} parent=5 // pred_check_branch
        %233 = sbr.rel (%p231) target = $region40
      $region39: #{tpu_custom_call.1} parent=5 // pred_region
        %s234 = ssub.s32 %s12, 2
        // Predicated region
        $region41: #{tpu_custom_call.1} parent=39 // pred_check
          %p235 = pneg %p109
        $region42: #{tpu_custom_call.1} parent=39 // pred_check_branch
          %237 = sbr.rel (%p235) target = $region44
        $region43: #{tpu_custom_call.1} parent=39 // pred_region
          %s238 = sand.u32 %s94, 1
          %s239 = scalar_lea.sflag [#allocation3], %s238
          %s240 = sand.u32 %s94, 1
          %s241 = smul.addr %s240, 4
          %s242 = scalar_lea.vmem [#allocation2], %s241
          %243 = dma.done %s239, 64
        $region44: #{tpu_custom_call.1} parent=39 // pred_fallthru
          _
      $region40: #{tpu_custom_call.1} parent=5 // pred_fallthru
        _
    $region6: #{tpu_custom_call.1} parent=1 // loop_footer
      %s16 = sadd.s32 1, %s12
    $region7: #{tpu_custom_call.1} parent=1 // loop_footer_branch
      %11 = sbr.rel target = $region3
    $region8: #{tpu_custom_call.1} parent=1 // loop_exit
      _
    %244 = vsyncpa [#allocation3], 1
    %s245 = scalar_lea.sflag [#allocation3], 1
    %246 = vsyncpa %s245, 1

</llo_original>
